<compile_context>
chip_gen: v7x
topology: tpu7x:2x2x1
jax: 0.10.0
libtpu: 0.0.40
codegen_flags: <defaults>
</compile_context>

<pallas_src>
import functools

import jax
import jax.numpy as jnp
import numpy as np
from jax.experimental import pallas as pl
from jax.experimental.pallas import tpu as pltpu


# ---------------------------------------------------------------------------
# Fused kernel: batched projection + global contrastive loss
# ---------------------------------------------------------------------------
def _fused_kernel(alpha_ref,            # SMEM (2,)  : DyT alphas (a1, a2)
                  za_ref, zb_ref,       # VMEM (N,H) each
                  w1_ref, w2_ref, w3_ref,   # VMEM (H,H),(H,H),(H,O)
                  vec6_ref,             # VMEM (6,H) : b1,g1,be1,b2,g2,be2
                  b3_ref,               # VMEM (1,O)
                  pos_ref, post_ref,    # VMEM (N,N) : pos and pos.T
                  zcat_ref,             # VMEM (N,2O) output
                  loss_ref,             # SMEM (1,1) output
                  *, tau, lam):
    a1 = alpha_ref[0]
    a2 = alpha_ref[1]

    # --- batched projection: one (2N, H) MXU pass per Linear layer ----------
    x = jnp.concatenate([za_ref[...], zb_ref[...]], axis=0)       # (2N, H)

    v = vec6_ref[...]                                             # (6, H)
    b1, g1, be1 = v[0:1, :], v[1:2, :], v[2:3, :]
    b2, g2, be2 = v[3:4, :], v[4:5, :], v[5:6, :]

    h = jnp.dot(x, w1_ref[...], preferred_element_type=jnp.float32) + b1
    h = jnp.tanh(a1 * h) * g1 + be1                               # DyT 1
    h = jnp.dot(h, w2_ref[...], preferred_element_type=jnp.float32) + b2
    h = jnp.tanh(a2 * h) * g2 + be2                               # DyT 2
    z1 = jnp.dot(h, w3_ref[...], preferred_element_type=jnp.float32) + b3_ref[...]

    # project(): z1_proj * sigmoid(z2_proj) with z2_proj == z1_proj (same net)
    zp = z1 * jax.nn.sigmoid(z1)                                  # (2N, O)

    N = pos_ref.shape[0]
    O = zp.shape[1]
    za_p = zp[:N, :]
    zb_p = zp[N:, :]

    # --- z_cat output: one lane-dense (N, 2O) slab ---------------------------
    zcat_ref[:, 0:O] = za_p
    zcat_ref[:, O:2 * O] = zb_p

    # --- global contrast -----------------------------------------------------
    # Pre-normalize rows (folds the 1/(|a||b|) "den" matmul and 1/tau into the
    # operands): S = exp( (za/|za|/tau) @ (zb/|zb|)^T )
    inv_na = jax.lax.rsqrt(jnp.sum(za_p * za_p, axis=-1, keepdims=True))
    inv_nb = jax.lax.rsqrt(jnp.sum(zb_p * zb_p, axis=-1, keepdims=True))
    za_n = za_p * (inv_na * (1.0 / tau))
    zb_n = zb_p * inv_nb

    # contraction on last dims -> no zb.T materialization
    S = jnp.exp(jax.lax.dot_general(
        za_n, zb_n,
        dimension_numbers=(((1,), (1,)), ((), ())),
        preferred_element_type=jnp.float32))                      # (N, N)

    pos = pos_ref[...]
    pos_t = post_ref[...]

    # a -> b : row-normalized (divide folded: sum(A*pos) == sum(S*pos)/rowsum)
    row_sum = jnp.sum(S, axis=1, keepdims=True) + 1e-6            # (N, 1)
    num_a = jnp.sum(S * pos, axis=1, keepdims=True)               # (N, 1)
    lori_a = -jnp.mean(jnp.log(num_a / row_sum))

    # b -> a : S.T is never materialized; its row sums are S's column sums and
    # its pos-masked numerator is an axis-0 reduction of S * pos.T.
    col_sum = jnp.sum(S, axis=0, keepdims=True) + 1e-6            # (1, N)
    num_b = jnp.sum(S * pos_t, axis=0, keepdims=True)             # (1, N)
    lori_b = -jnp.mean(jnp.log(num_b / col_sum))

    loss_ref[0, 0] = lam * lori_a + (1.0 - lam) * lori_b


# ---------------------------------------------------------------------------
# Forward wrapper
# ---------------------------------------------------------------------------
def enhanced_contrast_forward(za, zb, pos, params, tau, lam):
    N = za.shape[0]
    O = params["w3"].shape[1]
    pos_t = pos.T   # exactness of the axis-0 b->a reformulation for general (non-symmetric) pos

    vmem = pl.BlockSpec(memory_space=pltpu.MemorySpace.VMEM)
    smem = pl.BlockSpec(memory_space=pltpu.MemorySpace.SMEM)

    zcat, loss = pl.pallas_call(
        functools.partial(_fused_kernel, tau=float(tau), lam=float(lam)),
        out_shape=(jax.ShapeDtypeStruct((N, 2 * O), jnp.float32),
                   jax.ShapeDtypeStruct((1, 1), jnp.float32)),
        in_specs=[smem] + [vmem] * 9,
        out_specs=(vmem, smem),
    )(params["alphas"], za, zb,
      params["w1"], params["w2"], params["w3"],
      params["vec6"], params["b3"], pos, pos_t)

    # TODO(synk): local_contrast (edge_index_map path) uses per-graph Python
    # loops + scatter_add_; forward is exercised with edge_index_map=None, so
    # local_loss == 0 exactly, matching PyTorch.
    return loss[0, 0], zcat


# ---------------------------------------------------------------------------
# Deterministic parameter construction (kaiming-style fan_in scaling), packed
# ---------------------------------------------------------------------------
def make_params(key, hidden_dim, output_dim):
    k1, k2, k3 = jax.random.split(key, 3)
    H, O = hidden_dim, output_dim
    scale = lambda fan_in: jnp.sqrt(2.0 / fan_in)
    return {
        "w1": jax.random.normal(k1, (H, H), jnp.float32) * scale(H),
        "w2": jax.random.normal(k2, (H, H), jnp.float32) * scale(H),
        "w3": jax.random.normal(k3, (H, O), jnp.float32) * scale(H),
        "b3": jnp.zeros((1, O), jnp.float32),
        # DyT alphas (a1, a2) packed for the SMEM scalar path.
        "alphas": jnp.full((2,), 0.5, jnp.float32),
        # (b1, g1, be1, b2, g2, be2) packed as a single (6, H) VMEM input.
        "vec6": jnp.stack([jnp.zeros(H), jnp.ones(H), jnp.zeros(H),
                           jnp.zeros(H), jnp.ones(H), jnp.zeros(H)]
                          ).astype(jnp.float32),
    }


# ---------------------------------------------------------------------------
# Pure-JAX reference (mirrors the PyTorch module exactly)
# ---------------------------------------------------------------------------
def _ref_forward(za, zb, pos, p, tau, lam):
    a1, a2 = p["alphas"][0], p["alphas"][1]
    b1, g1, be1 = p["vec6"][0:1], p["vec6"][1:2], p["vec6"][2:3]
    b2, g2, be2 = p["vec6"][3:4], p["vec6"][4:5], p["vec6"][5:6]

    def proj(z):
        h = z @ p["w1"] + b1
        h = jnp.tanh(a1 * h) * g1 + be1
        h = h @ p["w2"] + b2
        h = jnp.tanh(a2 * h) * g2 + be2
        z1 = h @ p["w3"] + p["b3"]
        return z1 * jax.nn.sigmoid(z1)

    za_p, zb_p = proj(za), proj(zb)

    def sim(z1, z2):
        n1 = jnp.linalg.norm(z1, axis=-1, keepdims=True)
        n2 = jnp.linalg.norm(z2, axis=-1, keepdims=True)
        return jnp.exp((z1 @ z2.T) / (n1 @ n2.T) / tau)

    S = sim(za_p, zb_p)
    A = S / (S.sum(1, keepdims=True) + 1e-6)
    lori_a = -jnp.mean(jnp.log((A * pos).sum(-1)))
    St = S.T
    B = St / (St.sum(1, keepdims=True) + 1e-6)
    lori_b = -jnp.mean(jnp.log((B * pos).sum(-1)))
    total = lam * lori_a + (1 - lam) * lori_b
    return total, jnp.concatenate([za_p, zb_p], axis=1)


if __name__ == "__main__":
    N, H, O = 16, 32, 16
    tau, lam = 0.5, 0.5

    key = jax.random.PRNGKey(0)
    k_par, k_a, k_b = jax.random.split(key, 3)
    params = make_params(k_par, H, O)

    za = jax.random.normal(k_a, (N, H), jnp.float32)
    zb = jax.random.normal(k_b, (N, H), jnp.float32)

    # dense positive-pair mask: diagonal + one asymmetric extra positive so the
    # pos.T-based b->a reduction is actually exercised (not trivially symmetric)
    pos = jnp.eye(N, dtype=jnp.float32).at[0, 3].set(1.0)

    total_loss, z_cat = enhanced_contrast_forward(za, zb, pos, params, tau, lam)
    jax.block_until_ready((total_loss, z_cat))

    ref_loss, ref_cat = _ref_forward(za, zb, pos, params, tau, lam)
    np.testing.assert_allclose(np.asarray(total_loss), np.asarray(ref_loss),
                               rtol=1e-4, atol=1e-5)
    np.testing.assert_allclose(np.asarray(z_cat), np.asarray(ref_cat),
                               rtol=1e-4, atol=1e-5)
    assert z_cat.shape == (N, 2 * O)

    print("KERNEL_OK")
</pallas_src>

<mosaic_0001>
module attributes {stable_mosaic.version = 11 : i64} {
  func.func @_fused_kernel(%arg0: memref<2xf32, #tpu.memory_space<smem>>, %arg1: memref<16x32xf32, #tpu.memory_space<vmem>>, %arg2: memref<16x32xf32, #tpu.memory_space<vmem>>, %arg3: memref<32x32xf32, #tpu.memory_space<vmem>>, %arg4: memref<32x32xf32, #tpu.memory_space<vmem>>, %arg5: memref<32x16xf32, #tpu.memory_space<vmem>>, %arg6: memref<6x32xf32, #tpu.memory_space<vmem>>, %arg7: memref<1x16xf32, #tpu.memory_space<vmem>>, %arg8: memref<16x16xf32, #tpu.memory_space<vmem>>, %arg9: memref<16x16xf32, #tpu.memory_space<vmem>>, %arg10: memref<16x32xf32, #tpu.memory_space<vmem>>, %arg11: memref<1x1xf32, #tpu.memory_space<smem>>) attributes {dimension_semantics = [], scalar_prefetch = 0 : i64, scratch_operands = 0 : i64, tpu.core_type = #tpu.core_type<tc>} {
    %c0 = arith.constant 0 : index
    %0 = memref.load %arg0[%c0] : memref<2xf32, #tpu.memory_space<smem>>
    %c1 = arith.constant 1 : index
    %1 = memref.load %arg0[%c1] : memref<2xf32, #tpu.memory_space<smem>>
    %c0_0 = arith.constant 0 : index
    %c0_1 = arith.constant 0 : index
    %2 = vector.load %arg1[%c0_0, %c0_1] : memref<16x32xf32, #tpu.memory_space<vmem>>, vector<16x32xf32>
    %c0_2 = arith.constant 0 : index
    %c0_3 = arith.constant 0 : index
    %3 = vector.load %arg2[%c0_2, %c0_3] : memref<16x32xf32, #tpu.memory_space<vmem>>, vector<16x32xf32>
    %4 = tpu.concatenate %2, %3 in 0 : vector<16x32xf32>, vector<16x32xf32> -> vector<32x32xf32>
    %c0_4 = arith.constant 0 : index
    %c0_5 = arith.constant 0 : index
    %5 = vector.load %arg6[%c0_4, %c0_5] : memref<6x32xf32, #tpu.memory_space<vmem>>, vector<6x32xf32>
    %6 = vector.extract_strided_slice %5 {offsets = [0, 0], sizes = [1, 32], strides = [1, 1]} : vector<6x32xf32> to vector<1x32xf32>
    %7 = vector.extract_strided_slice %5 {offsets = [1, 0], sizes = [1, 32], strides = [1, 1]} : vector<6x32xf32> to vector<1x32xf32>
    %8 = vector.extract_strided_slice %5 {offsets = [2, 0], sizes = [1, 32], strides = [1, 1]} : vector<6x32xf32> to vector<1x32xf32>
    %9 = vector.extract_strided_slice %5 {offsets = [3, 0], sizes = [1, 32], strides = [1, 1]} : vector<6x32xf32> to vector<1x32xf32>
    %10 = vector.extract_strided_slice %5 {offsets = [4, 0], sizes = [1, 32], strides = [1, 1]} : vector<6x32xf32> to vector<1x32xf32>
    %11 = vector.extract_strided_slice %5 {offsets = [5, 0], sizes = [1, 32], strides = [1, 1]} : vector<6x32xf32> to vector<1x32xf32>
    %c0_6 = arith.constant 0 : index
    %c0_7 = arith.constant 0 : index
    %12 = vector.load %arg3[%c0_6, %c0_7] : memref<32x32xf32, #tpu.memory_space<vmem>>, vector<32x32xf32>
    %cst = arith.constant dense<0.000000e+00> : vector<32x32xf32>
    %13 = tpu.matmul %4, %12, %cst {dimension_numbers = #tpu.dot_dimension_numbers<[1], [0], [0], [1], [0, 0, 1, 1], [], []>} : vector<32x32xf32>, vector<32x32xf32>, vector<32x32xf32> -> vector<32x32xf32>
    %14 = vector.broadcast %6 : vector<1x32xf32> to vector<32x32xf32>
    %15 = arith.addf %13, %14 : vector<32x32xf32>
    %16 = vector.broadcast %0 : f32 to vector<32x32xf32>
    %17 = arith.mulf %16, %15 : vector<32x32xf32>
    %18 = math.tanh %17 : vector<32x32xf32>
    %19 = vector.broadcast %7 : vector<1x32xf32> to vector<32x32xf32>
    %20 = arith.mulf %18, %19 : vector<32x32xf32>
    %21 = vector.broadcast %8 : vector<1x32xf32> to vector<32x32xf32>
    %22 = arith.addf %20, %21 : vector<32x32xf32>
    %c0_8 = arith.constant 0 : index
    %c0_9 = arith.constant 0 : index
    %23 = vector.load %arg4[%c0_8, %c0_9] : memref<32x32xf32, #tpu.memory_space<vmem>>, vector<32x32xf32>
    %cst_10 = arith.constant dense<0.000000e+00> : vector<32x32xf32>
    %24 = tpu.matmul %22, %23, %cst_10 {dimension_numbers = #tpu.dot_dimension_numbers<[1], [0], [0], [1], [0, 0, 1, 1], [], []>} : vector<32x32xf32>, vector<32x32xf32>, vector<32x32xf32> -> vector<32x32xf32>
    %25 = vector.broadcast %9 : vector<1x32xf32> to vector<32x32xf32>
    %26 = arith.addf %24, %25 : vector<32x32xf32>
    %27 = vector.broadcast %1 : f32 to vector<32x32xf32>
    %28 = arith.mulf %27, %26 : vector<32x32xf32>
    %29 = math.tanh %28 : vector<32x32xf32>
    %30 = vector.broadcast %10 : vector<1x32xf32> to vector<32x32xf32>
    %31 = arith.mulf %29, %30 : vector<32x32xf32>
    %32 = vector.broadcast %11 : vector<1x32xf32> to vector<32x32xf32>
    %33 = arith.addf %31, %32 : vector<32x32xf32>
    %c0_11 = arith.constant 0 : index
    %c0_12 = arith.constant 0 : index
    %34 = vector.load %arg5[%c0_11, %c0_12] : memref<32x16xf32, #tpu.memory_space<vmem>>, vector<32x16xf32>
    %cst_13 = arith.constant dense<0.000000e+00> : vector<32x16xf32>
    %35 = tpu.matmul %33, %34, %cst_13 {dimension_numbers = #tpu.dot_dimension_numbers<[1], [0], [0], [1], [0, 0, 1, 1], [], []>} : vector<32x32xf32>, vector<32x16xf32>, vector<32x16xf32> -> vector<32x16xf32>
    %c0_14 = arith.constant 0 : index
    %c0_15 = arith.constant 0 : index
    %36 = vector.load %arg7[%c0_14, %c0_15] : memref<1x16xf32, #tpu.memory_space<vmem>>, vector<1x16xf32>
    %37 = vector.broadcast %36 : vector<1x16xf32> to vector<32x16xf32>
    %38 = arith.addf %35, %37 : vector<32x16xf32>
    %39 = arith.negf %38 : vector<32x16xf32>
    %40 = math.exp %39 : vector<32x16xf32>
    %cst_16 = arith.constant 1.000000e+00 : f32
    %41 = vector.broadcast %cst_16 : f32 to vector<32x16xf32>
    %42 = arith.addf %41, %40 : vector<32x16xf32>
    %43 = arith.divf %41, %42 : vector<32x16xf32>
    %44 = arith.mulf %38, %43 : vector<32x16xf32>
    %45 = vector.extract_strided_slice %44 {offsets = [0, 0], sizes = [16, 16], strides = [1, 1]} : vector<32x16xf32> to vector<16x16xf32>
    %46 = vector.extract_strided_slice %44 {offsets = [16, 0], sizes = [16, 16], strides = [1, 1]} : vector<32x16xf32> to vector<16x16xf32>
    %c0_17 = arith.constant 0 : index
    %c0_18 = arith.constant 0 : index
    %47 = vector.load %arg10[%c0_17, %c0_18] : memref<16x32xf32, #tpu.memory_space<vmem>>, vector<16x16xf32>
    tpu.vector_store %arg10[%c0_17, %c0_18], %45 {strides = array<i32>} : memref<16x32xf32, #tpu.memory_space<vmem>>, vector<16x16xf32>,
    %c0_19 = arith.constant 0 : index
    %c16 = arith.constant 16 : index
    %48 = vector.load %arg10[%c0_19, %c16] : memref<16x32xf32, #tpu.memory_space<vmem>>, vector<16x16xf32>
    tpu.vector_store %arg10[%c0_19, %c16], %46 {strides = array<i32>} : memref<16x32xf32, #tpu.memory_space<vmem>>, vector<16x16xf32>,
    %49 = arith.mulf %45, %45 : vector<16x16xf32>
    %cst_20 = arith.constant dense<0.000000e+00> : vector<16xf32>
    %50 = vector.multi_reduction <add>, %49, %cst_20 [1] : vector<16x16xf32> to vector<16xf32>
    %51 = vector.shape_cast %50 : vector<16xf32> to vector<16x1xf32>
    %52 = math.rsqrt %51 : vector<16x1xf32>
    %53 = arith.mulf %46, %46 : vector<16x16xf32>
    %cst_21 = arith.constant dense<0.000000e+00> : vector<16xf32>
    %54 = vector.multi_reduction <add>, %53, %cst_21 [1] : vector<16x16xf32> to vector<16xf32>
    %55 = vector.shape_cast %54 : vector<16xf32> to vector<16x1xf32>
    %56 = math.rsqrt %55 : vector<16x1xf32>
    %cst_22 = arith.constant 2.000000e+00 : f32
    %57 = vector.broadcast %cst_22 : f32 to vector<16x1xf32>
    %58 = arith.mulf %52, %57 : vector<16x1xf32>
    %59 = vector.broadcast %58 : vector<16x1xf32> to vector<16x16xf32>
    %60 = arith.mulf %45, %59 : vector<16x16xf32>
    %61 = vector.broadcast %56 : vector<16x1xf32> to vector<16x16xf32>
    %62 = arith.mulf %46, %61 : vector<16x16xf32>
    %cst_23 = arith.constant dense<0.000000e+00> : vector<16x16xf32>
    %63 = tpu.matmul %60, %62, %cst_23 {dimension_numbers = #tpu.dot_dimension_numbers<[1], [1], [0], [0], [0, 0, 1, 0], [], []>} : vector<16x16xf32>, vector<16x16xf32>, vector<16x16xf32> -> vector<16x16xf32>
    %64 = math.exp %63 : vector<16x16xf32>
    %c0_24 = arith.constant 0 : index
    %c0_25 = arith.constant 0 : index
    %65 = vector.load %arg8[%c0_24, %c0_25] : memref<16x16xf32, #tpu.memory_space<vmem>>, vector<16x16xf32>
    %c0_26 = arith.constant 0 : index
    %c0_27 = arith.constant 0 : index
    %66 = vector.load %arg9[%c0_26, %c0_27] : memref<16x16xf32, #tpu.memory_space<vmem>>, vector<16x16xf32>
    %cst_28 = arith.constant dense<0.000000e+00> : vector<16xf32>
    %67 = vector.multi_reduction <add>, %64, %cst_28 [1] : vector<16x16xf32> to vector<16xf32>
    %68 = vector.shape_cast %67 : vector<16xf32> to vector<16x1xf32>
    %cst_29 = arith.constant 9.99999997E-7 : f32
    %69 = vector.broadcast %cst_29 : f32 to vector<16x1xf32>
    %70 = arith.addf %68, %69 : vector<16x1xf32>
    %71 = arith.mulf %64, %65 : vector<16x16xf32>
    %cst_30 = arith.constant dense<0.000000e+00> : vector<16xf32>
    %72 = vector.multi_reduction <add>, %71, %cst_30 [1] : vector<16x16xf32> to vector<16xf32>
    %73 = vector.shape_cast %72 : vector<16xf32> to vector<16x1xf32>
    %74 = arith.divf %73, %70 : vector<16x1xf32>
    %75 = math.log %74 : vector<16x1xf32>
    %76 = vector.shape_cast %75 : vector<16x1xf32> to vector<1x16x1xf32>
    %cst_31 = arith.constant dense<0.000000e+00> : vector<1xf32>
    %77 = vector.multi_reduction <add>, %76, %cst_31 [1, 2] : vector<1x16x1xf32> to vector<1xf32>
    %78 = vector.shape_cast %77 : vector<1xf32> to vector<1x1x1xf32>
    %79 = vector.extract %78[0, 0, 0] : f32 from vector<1x1x1xf32>
    %cst_32 = arith.constant 1.600000e+01 : f32
    %80 = arith.divf %79, %cst_32 : f32
    %cst_33 = arith.constant 0.000000e+00 : f32
    %81 = arith.subf %cst_33, %80 : f32
    %cst_34 = arith.constant dense<0.000000e+00> : vector<16xf32>
    %82 = vector.multi_reduction <add>, %64, %cst_34 [0] : vector<16x16xf32> to vector<16xf32>
    %83 = vector.shape_cast %82 : vector<16xf32> to vector<1x16xf32>
    %cst_35 = arith.constant 9.99999997E-7 : f32
    %84 = vector.broadcast %cst_35 : f32 to vector<1x16xf32>
    %85 = arith.addf %83, %84 : vector<1x16xf32>
    %86 = arith.mulf %64, %66 : vector<16x16xf32>
    %cst_36 = arith.constant dense<0.000000e+00> : vector<16xf32>
    %87 = vector.multi_reduction <add>, %86, %cst_36 [0] : vector<16x16xf32> to vector<16xf32>
    %88 = vector.shape_cast %87 : vector<16xf32> to vector<1x16xf32>
    %89 = arith.divf %88, %85 : vector<1x16xf32>
    %90 = math.log %89 : vector<1x16xf32>
    %91 = vector.shape_cast %90 : vector<1x16xf32> to vector<1x1x16xf32>
    %cst_37 = arith.constant dense<0.000000e+00> : vector<1xf32>
    %92 = vector.multi_reduction <add>, %91, %cst_37 [1, 2] : vector<1x1x16xf32> to vector<1xf32>
    %93 = vector.shape_cast %92 : vector<1xf32> to vector<1x1x1xf32>
    %94 = vector.extract %93[0, 0, 0] : f32 from vector<1x1x1xf32>
    %cst_38 = arith.constant 1.600000e+01 : f32
    %95 = arith.divf %94, %cst_38 : f32
    %cst_39 = arith.constant 0.000000e+00 : f32
    %96 = arith.subf %cst_39, %95 : f32
    %cst_40 = arith.constant 5.000000e-01 : f32
    %97 = arith.mulf %cst_40, %81 : f32
    %cst_41 = arith.constant 5.000000e-01 : f32
    %98 = arith.mulf %cst_41, %96 : f32
    %99 = arith.addf %97, %98 : f32
    %c0_42 = arith.constant 0 : index
    %c0_43 = arith.constant 0 : index
    %100 = memref.load %arg11[%c0_42, %c0_43] : memref<1x1xf32, #tpu.memory_space<smem>>
    memref.store %99, %arg11[%c0_42, %c0_43] : memref<1x1xf32, #tpu.memory_space<smem>>
    return
  }
}

</mosaic_0001>

<llo_original>
// kernel: tpu_custom_call.1
$region0: #{tpu_custom_call.1}
  #allocation0 [shape = 'u32[]', space=smem, size = 0x4, offset = 0x4, fixed_abs, tag = 'smem constant byte address 0x4 - core index']
  #allocation1 [shape = 'u32[144,128]{1,0:T(1,128)}', space=vmem, size = 0x12000, scoped, tag = 'internal scratch']
  %s0 = inlined_call_operand.vmem [shape: f32[2], index: 0, kind: input, shape index: {}]
  %s1 = inlined_call_operand.vmem [shape: f32[16,32], index: 1, kind: input, shape index: {}]
  %s2 = inlined_call_operand.hbm [shape: f32[16,32], index: 2, kind: input, shape index: {}]
  %s3 = inlined_call_operand.vmem [shape: f32[32,32], index: 3, kind: input, shape index: {}]
  %s4 = inlined_call_operand.hbm [shape: f32[32,32], index: 4, kind: input, shape index: {}]
  %s5 = inlined_call_operand.vmem [shape: f32[32,16], index: 5, kind: input, shape index: {}]
  %s6 = inlined_call_operand.hbm [shape: f32[6,32], index: 6, kind: input, shape index: {}]
  %s7 = inlined_call_operand.vmem [shape: f32[1,16], index: 7, kind: input, shape index: {}]
  %s8 = inlined_call_operand.hbm [shape: f32[16,16], index: 8, kind: input, shape index: {}]
  %s9 = inlined_call_operand.vmem [shape: f32[16,16], index: 9, kind: input, shape index: {}]
  %s10 = inlined_call_operand.hbm [shape: f32[16,32], index: 10, kind: output, shape index: {0}]
  %s11 = inlined_call_operand.hbm [shape: f32[1,1], index: 11, kind: output, shape index: {1}]
  %12 = xla_tuple %s10, %s11
  %s13 = sld [smem:[#allocation0]]
  $region78: #{tpu_custom_call.1} parent=0
    _
  %s15 = ssub.s32 1, %s13
  %s16 = scalar_select 0, %s15, %s13
  $region1: #{tpu_custom_call.1} parent=0
    #allocation2 [shape = 'u8[512]{0}', space=smem, size = 0x200, scoped, tag = 'input window, operand 0, single buffered']
    #allocation3 [shape = 's32[1]{0}', space=sflag, size = 0x4, scoped, tag = 'scoped memory for tpu_custom_call.1']
    #allocation4 [shape = 's32[1]{0}', space=sflag, size = 0x4, scoped, tag = 'scoped memory for tpu_custom_call.1']
    #allocation5 [shape = 's32[1]{0}', space=sflag, size = 0x4, scoped, tag = 'scoped memory for tpu_custom_call.1']
    #allocation6 [shape = 's32[1]{0}', space=sflag, size = 0x4, scoped, tag = 'scoped memory for tpu_custom_call.1']
    #allocation7 [shape = 'u8[8192]{0}', space=vmem, size = 0x2000, scoped, tag = 'input window, operand 2, single buffered']
    #allocation8 [shape = 'u8[16384]{0}', space=vmem, size = 0x4000, scoped, tag = 'input window, operand 4, single buffered']
    #allocation9 [shape = 's32[1]{0}', space=sflag, size = 0x4, scoped, tag = 'scoped memory for tpu_custom_call.1']
    #allocation10 [shape = 'u8[4096]{0}', space=vmem, size = 0x1000, scoped, tag = 'input window, operand 6, single buffered']
    #allocation11 [shape = 'u8[8192]{0}', space=vmem, size = 0x2000, scoped, tag = 'input window, operand 8, single buffered']
    #allocation12 [shape = 's32[1]{0}', space=sflag, size = 0x4, scoped, tag = 'scoped memory for tpu_custom_call.1']
    #allocation13 [shape = 'u8[8192]{0}', space=vmem, size = 0x2000, scoped, tag = 'output window, operand 0, single buffered']
    #allocation14 [shape = 'u8[512]{0}', space=smem, size = 0x200, scoped, tag = 'output window, operand 1, single buffered']
    %17 = vsyncpa [#allocation6], 0
    %18 = vsyncpa [#allocation3], 0
    %19 = vsyncpa [#allocation9], 0
    %20 = vsyncpa [#allocation12], 0
    %21 = vsyncpa [#allocation4], 0
    %22 = vsyncpa [#allocation5], 0
    // Predicated region
    $region2: #{tpu_custom_call.1} parent=1 // pred_check
      _
    $region3: #{tpu_custom_call.1} parent=1 // pred_check_branch
      %24 = sbr.rel (0) target = $region5
    $region4: #{tpu_custom_call.1} parent=1 // pred_region
      %s26 = ssub.s32 16, 16
      %27 = vsyncadd [#allocation6], %s26
      %s29 = sshll.u32 %s0, 4
      %s30 = int_to_ptr.vmem [resolvable:$true] %s29
      %32 = dma.vmem_to_smem %s30, 16, [#allocation2], [#allocation6]
    $region5: #{tpu_custom_call.1} parent=1 // pred_fallthru
      _
    // Predicated region
    $region6: #{tpu_custom_call.1} parent=1 // pred_check
      _
    $region7: #{tpu_custom_call.1} parent=1 // pred_check_branch
      %34 = sbr.rel (0) target = $region9
    $region8: #{tpu_custom_call.1} parent=1 // pred_region
      _
    $region9: #{tpu_custom_call.1} parent=1 // pred_fallthru
      _
    // Predicated region
    $region10: #{tpu_custom_call.1} parent=1 // pred_check
      _
    $region11: #{tpu_custom_call.1} parent=1 // pred_check_branch
      %36 = sbr.rel (0) target = $region13
    $region12: #{tpu_custom_call.1} parent=1 // pred_region
      %s38 = ssub.s32 256, 256
      %39 = vsyncadd [#allocation3], %s38
      %s40 = sshll.u32 [#allocation7], 4
      %s41 = int_to_ptr.vmem [resolvable:$true] %s40
      %46 = dma.hbm_to_vmem [thread:$0]  %s2, 256, %s41, [#allocation3], 128, 128, 8
    $region13: #{tpu_custom_call.1} parent=1 // pred_fallthru
      _
    // Predicated region
    $region14: #{tpu_custom_call.1} parent=1 // pred_check
      _
    $region15: #{tpu_custom_call.1} parent=1 // pred_check_branch
      %48 = sbr.rel (0) target = $region17
    $region16: #{tpu_custom_call.1} parent=1 // pred_region
      _
    $region17: #{tpu_custom_call.1} parent=1 // pred_fallthru
      _
    // Predicated region
    $region18: #{tpu_custom_call.1} parent=1 // pred_check
      _
    $region19: #{tpu_custom_call.1} parent=1 // pred_check_branch
      %50 = sbr.rel (0) target = $region21
    $region20: #{tpu_custom_call.1} parent=1 // pred_region
      %s52 = ssub.s32 512, 512
      %53 = vsyncadd [#allocation9], %s52
      %s54 = sshll.u32 [#allocation8], 4
      %s55 = int_to_ptr.vmem [resolvable:$true] %s54
      %60 = dma.hbm_to_vmem [thread:$0]  %s4, 512, %s55, [#allocation9], 128, 128, 8
    $region21: #{tpu_custom_call.1} parent=1 // pred_fallthru
      _
    // Predicated region
    $region22: #{tpu_custom_call.1} parent=1 // pred_check
      _
    $region23: #{tpu_custom_call.1} parent=1 // pred_check_branch
      %62 = sbr.rel (0) target = $region25
    $region24: #{tpu_custom_call.1} parent=1 // pred_region
      _
    $region25: #{tpu_custom_call.1} parent=1 // pred_fallthru
      _
    // Predicated region
    $region26: #{tpu_custom_call.1} parent=1 // pred_check
      _
    $region27: #{tpu_custom_call.1} parent=1 // pred_check_branch
      %64 = sbr.rel (0) target = $region29
    $region28: #{tpu_custom_call.1} parent=1 // pred_region
      %s66 = ssub.s32 128, 128
      %67 = vsyncadd [#allocation9], %s66
      %s69 = sshll.u32 [#allocation10], 4
      %s70 = int_to_ptr.vmem [resolvable:$true] %s69
      %72 = dma.hbm_to_vmem [thread:$0]  %s6, 128, %s70, [#allocation9]
    $region29: #{tpu_custom_call.1} parent=1 // pred_fallthru
      _
    // Predicated region
    $region30: #{tpu_custom_call.1} parent=1 // pred_check
      _
    $region31: #{tpu_custom_call.1} parent=1 // pred_check_branch
      %74 = sbr.rel (0) target = $region33
    $region32: #{tpu_custom_call.1} parent=1 // pred_region
      _
    $region33: #{tpu_custom_call.1} parent=1 // pred_fallthru
      _
    // Predicated region
    $region34: #{tpu_custom_call.1} parent=1 // pred_check
      _
    $region35: #{tpu_custom_call.1} parent=1 // pred_check_branch
      %76 = sbr.rel (0) target = $region37
    $region36: #{tpu_custom_call.1} parent=1 // pred_region
      %s78 = ssub.s32 256, 256
      %79 = vsyncadd [#allocation12], %s78
      %s80 = sshll.u32 [#allocation11], 4
      %s81 = int_to_ptr.vmem [resolvable:$true] %s80
      %86 = dma.hbm_to_vmem [thread:$0]  %s8, 256, %s81, [#allocation12], 128, 128, 8
    $region37: #{tpu_custom_call.1} parent=1 // pred_fallthru
      _
    // Predicated region
    $region38: #{tpu_custom_call.1} parent=1 // pred_check
      _
    $region39: #{tpu_custom_call.1} parent=1 // pred_check_branch
      %88 = sbr.rel (0) target = $region41
    $region40: #{tpu_custom_call.1} parent=1 // pred_region
      _
    $region41: #{tpu_custom_call.1} parent=1 // pred_fallthru
      _
    // Predicated region
    $region42: #{tpu_custom_call.1} parent=1 // pred_check
      _
    $region43: #{tpu_custom_call.1} parent=1 // pred_check_branch
      %90 = sbr.rel (0) target = $region45
    $region44: #{tpu_custom_call.1} parent=1 // pred_region
      %91 = dma.done [#allocation6], 16
    $region45: #{tpu_custom_call.1} parent=1 // pred_fallthru
      _
    // Predicated region
    $region46: #{tpu_custom_call.1} parent=1 // pred_check
      _
    $region47: #{tpu_custom_call.1} parent=1 // pred_check_branch
      %93 = sbr.rel (0) target = $region49
    $region48: #{tpu_custom_call.1} parent=1 // pred_region
      %94 = dma.done [#allocation3], 256
    $region49: #{tpu_custom_call.1} parent=1 // pred_fallthru
      _
    // Predicated region
    $region50: #{tpu_custom_call.1} parent=1 // pred_check
      _
    $region51: #{tpu_custom_call.1} parent=1 // pred_check_branch
      %96 = sbr.rel (0) target = $region53
    $region52: #{tpu_custom_call.1} parent=1 // pred_region
      %97 = dma.done [#allocation9], 512
    $region53: #{tpu_custom_call.1} parent=1 // pred_fallthru
      _
    // Predicated region
    $region54: #{tpu_custom_call.1} parent=1 // pred_check
      _
    $region55: #{tpu_custom_call.1} parent=1 // pred_check_branch
      %99 = sbr.rel (0) target = $region57
    $region56: #{tpu_custom_call.1} parent=1 // pred_region
      %100 = dma.done [#allocation9], 128
    $region57: #{tpu_custom_call.1} parent=1 // pred_fallthru
      _
    // Predicated region
    $region58: #{tpu_custom_call.1} parent=1 // pred_check
      _
    $region59: #{tpu_custom_call.1} parent=1 // pred_check_branch
      %102 = sbr.rel (0) target = $region61
    $region60: #{tpu_custom_call.1} parent=1 // pred_region
      %103 = dma.done [#allocation12], 256
    $region61: #{tpu_custom_call.1} parent=1 // pred_fallthru
      _
    %104 = sfence
    %s105 = sld [smem:[#allocation2]]
    %s106 = sld [smem:[#allocation2 + $0x1]]
    %v107 = vld [vmem:[%s1] sm:$0xff]
    %v108 = vld [vmem:[%s1 + $0x8] sm:$0xff]
    %v109 = vld [vmem:[#allocation7] sm:$0xff]
    %v110 = vld [vmem:[#allocation7 + $0x8] sm:$0xff]
    %v111 = vld [vmem:[#allocation10] sm:$0x3f]
    %v112 = vld [vmem:[%s3] sm:$0xff]
    %v113 = vld [vmem:[%s3 + $0x8] sm:$0xff]
    %v114 = vld [vmem:[%s3 + $0x10] sm:$0xff]
    %v115 = vld [vmem:[%s3 + $0x18] sm:$0xff]
    %v116 = vlaneseq
    %v117 = vshrl.u32 %v116, 7
    %v118 = vsub.s32 0, %v117
    %v119 = vrot.slane %v111, %v118
    %vm120 = vcmask 261120
    %v122 = vsel %vm120, %v107, 0
    %v125 = vsel %vm120, %v108, 0
    %v128 = vsel %vm120, %v109, 0
    %v131 = vsel %vm120, %v110, 0
    %133 = vmatprep.subr.mxu0 0.0
    %134 = vmatpush1.msra.mxu0 %v112
    %135 = vmatprep.subr.mxu0 0.0
    %136 = vmatpush1.msra.mxu0 %v113
    %137 = vmatprep.subr.mxu0 0.0
    %138 = vmatpush1.msra.mxu0 %v114
    %139 = vmatprep.subr.mxu0 0.0
    %140 = vmatpush1.msra.mxu0 %v115
    %141 = vmatprep.subr.mxu0 0.0
    %142 = vmatpush1.msra.mxu0 0.0
    %143 = vmatprep.subr.mxu0 0.0
    %144 = vmatpush1.msra.mxu0 0.0
    %145 = vmatprep.subr.mxu0 0.0
    %146 = vmatpush1.msra.mxu0 0.0
    %147 = vmatprep.subr.mxu0 0.0
    %148 = vmatpush1.msra.mxu0 0.0
    %149 = vmatprep.subr.mxu0 0.0
    %150 = vmatpush1.msra.mxu0 0.0
    %151 = vmatprep.subr.mxu0 0.0
    %152 = vmatpush1.msra.mxu0 0.0
    %153 = vmatprep.subr.mxu0 0.0
    %154 = vmatpush1.msra.mxu0 0.0
    %155 = vmatprep.subr.mxu0 0.0
    %156 = vmatpush1.msra.mxu0 0.0
    %157 = vmatprep.subr.mxu0 0.0
    %158 = vmatpush1.msra.mxu0 0.0
    %159 = vmatprep.subr.mxu0 0.0
    %160 = vmatpush1.msra.mxu0 0.0
    %161 = vmatprep.subr.mxu0 0.0
    %162 = vmatpush1.msra.mxu0 0.0
    %163 = vmatprep.subr.mxu0 0.0
    %164 = vmatpush1.msra.mxu0 0.0
    %165 = vmatprep.subr.mxu0 0.0
    %166 = vmatpush1.msra.mxu0 0.0
    %167 = vmatprep.subr.mxu0 0.0
    %168 = vmatpush1.msra.mxu0 0.0
    %169 = vmatprep.subr.mxu0 0.0
    %170 = vmatpush1.msra.mxu0 0.0
    %171 = vmatprep.subr.mxu0 0.0
    %172 = vmatpush1.msra.mxu0 0.0
    %173 = vmatprep.subr.mxu0 0.0
    %174 = vmatpush1.msra.mxu0 0.0
    %175 = vmatprep.subr.mxu0 0.0
    %176 = vmatpush1.msra.mxu0 0.0
    %177 = vmatprep.subr.mxu0 0.0
    %178 = vmatpush1.msra.mxu0 0.0
    %179 = vmatprep.subr.mxu0 0.0
    %180 = vmatpush1.msra.mxu0 0.0
    %181 = vmatprep.subr.mxu0 0.0
    %182 = vmatpush1.msra.mxu0 0.0
    %183 = vmatprep.subr.mxu0 0.0
    %184 = vmatpush1.msra.mxu0 0.0
    %185 = vmatprep.subr.mxu0 0.0
    %186 = vmatpush1.msra.mxu0 0.0
    %187 = vmatprep.subr.mxu0 0.0
    %188 = vmatpush1.msra.mxu0 0.0
    %189 = vmatprep.subr.mxu0 0.0
    %190 = vmatpush1.msra.mxu0 0.0
    %191 = vmatprep.subr.mxu0 0.0
    %192 = vmatpush1.msra.mxu0 0.0
    %193 = vmatprep.subr.mxu0 0.0
    %194 = vmatpush1.msra.mxu0 0.0
    %195 = vmatprep.subr.mxu0 0.0
    %196 = vmatpush1.msra.mxu0 0.0
    %197 = vmatprep.mubr.f32.mxu0 0.0
    %198 = vmatmul.mubr.f32.gmra.mrb[0].mxu0 %v122
    %v199 = vpop.f32.mrb[0].mxu0
    %v200 = vadd.f32 %v119, %v199
    %v201 = vpop.f32.mrb[0].mxu0
    %202 = vmatprep.mubr.f32.mxu0 0.0
    %203 = vmatmul.mubr.f32.gmra.mrb[0].mxu0 %v125
    %v204 = vpop.f32.mrb[0].mxu0
    %v205 = vadd.f32 %v119, %v204
    %v206 = vpop.f32.mrb[0].mxu0
    %207 = vmatprep.mubr.f32.mxu0 0.0
    %208 = vmatmul.mubr.f32.gmra.mrb[0].mxu0 %v128
    %v209 = vpop.f32.mrb[0].mxu0
    %v210 = vadd.f32 %v119, %v209
    %v211 = vpop.f32.mrb[0].mxu0
    %212 = vmatprep.mubr.f32.mxu0 0.0
    %213 = vmatmul.mubr.f32.gmra.mrb[0].mxu0 %v131
    %v214 = vpop.f32.mrb[0].mxu0
    %v215 = vadd.f32 %v119, %v214
    %v216 = vpop.f32.mrb[0].mxu0
    %217 = vdwg.mxu0
    %v218 = vstv %s105
    %v219 = vmul.f32 %v218, %v200
    %v220 = vmul.f32 %v218, %v205
    %v221 = vmul.f32 %v218, %v210
    %v222 = vmul.f32 %v218, %v215
    %v223 = vtanh.pop %v219
    %v224 = vtanh.pop %v220
    %v225 = vtanh.pop %v221
    %v226 = vtanh.pop %v222
    %v227 = vlaneseq
    %v228 = vshrl.u32 %v227, 7
    %v229 = vsub.s32 1, %v228
    %v230 = vrot.slane %v111, %v229
    %v231 = vmul.f32 %v223, %v230
    %v232 = vmul.f32 %v224, %v230
    %v233 = vmul.f32 %v225, %v230
    %v234 = vmul.f32 %v226, %v230
    %v235 = vlaneseq
    %v236 = vshrl.u32 %v235, 7
    %v237 = vsub.s32 2, %v236
    %v238 = vrot.slane %v111, %v237
    %v239 = vadd.f32 %v231, %v238
    %v240 = vadd.f32 %v232, %v238
    %v241 = vadd.f32 %v233, %v238
    %v242 = vadd.f32 %v234, %v238
    %v243 = vld [vmem:[#allocation8] sm:$0xff]
    %v244 = vld [vmem:[#allocation8 + $0x8] sm:$0xff]
    %v245 = vld [vmem:[#allocation8 + $0x10] sm:$0xff]
    %v246 = vld [vmem:[#allocation8 + $0x18] sm:$0xff]
    %v247 = vlaneseq
    %v248 = vshrl.u32 %v247, 7
    %v249 = vsub.s32 3, %v248
    %v250 = vrot.slane %v111, %v249
    %v252 = vsel %vm120, %v239, 0
    %v255 = vsel %vm120, %v240, 0
    %v258 = vsel %vm120, %v241, 0
    %v261 = vsel %vm120, %v242, 0
    %263 = vmatprep.subr.mxu0 0.0
    %264 = vmatpush1.msra.mxu0 %v243
    %265 = vmatprep.subr.mxu0 0.0
    %266 = vmatpush1.msra.mxu0 %v244
    %267 = vmatprep.subr.mxu0 0.0
    %268 = vmatpush1.msra.mxu0 %v245
    %269 = vmatprep.subr.mxu0 0.0
    %270 = vmatpush1.msra.mxu0 %v246
    %271 = vmatprep.subr.mxu0 0.0
    %272 = vmatpush1.msra.mxu0 0.0
    %273 = vmatprep.subr.mxu0 0.0
    %274 = vmatpush1.msra.mxu0 0.0
    %275 = vmatprep.subr.mxu0 0.0
    %276 = vmatpush1.msra.mxu0 0.0
    %277 = vmatprep.subr.mxu0 0.0
    %278 = vmatpush1.msra.mxu0 0.0
    %279 = vmatprep.subr.mxu0 0.0
    %280 = vmatpush1.msra.mxu0 0.0
    %281 = vmatprep.subr.mxu0 0.0
    %282 = vmatpush1.msra.mxu0 0.0
    %283 = vmatprep.subr.mxu0 0.0
    %284 = vmatpush1.msra.mxu0 0.0
    %285 = vmatprep.subr.mxu0 0.0
    %286 = vmatpush1.msra.mxu0 0.0
    %287 = vmatprep.subr.mxu0 0.0
    %288 = vmatpush1.msra.mxu0 0.0
    %289 = vmatprep.subr.mxu0 0.0
    %290 = vmatpush1.msra.mxu0 0.0
    %291 = vmatprep.subr.mxu0 0.0
    %292 = vmatpush1.msra.mxu0 0.0
    %293 = vmatprep.subr.mxu0 0.0
    %294 = vmatpush1.msra.mxu0 0.0
    %295 = vmatprep.subr.mxu0 0.0
    %296 = vmatpush1.msra.mxu0 0.0
    %297 = vmatprep.subr.mxu0 0.0
    %298 = vmatpush1.msra.mxu0 0.0
    %299 = vmatprep.subr.mxu0 0.0
    %300 = vmatpush1.msra.mxu0 0.0
    %301 = vmatprep.subr.mxu0 0.0
    %302 = vmatpush1.msra.mxu0 0.0
    %303 = vmatprep.subr.mxu0 0.0
    %304 = vmatpush1.msra.mxu0 0.0
    %305 = vmatprep.subr.mxu0 0.0
    %306 = vmatpush1.msra.mxu0 0.0
    %307 = vmatprep.subr.mxu0 0.0
    %308 = vmatpush1.msra.mxu0 0.0
    %309 = vmatprep.subr.mxu0 0.0
    %310 = vmatpush1.msra.mxu0 0.0
    %311 = vmatprep.subr.mxu0 0.0
    %312 = vmatpush1.msra.mxu0 0.0
    %313 = vmatprep.subr.mxu0 0.0
    %314 = vmatpush1.msra.mxu0 0.0
    %315 = vmatprep.subr.mxu0 0.0
    %316 = vmatpush1.msra.mxu0 0.0
    %317 = vmatprep.subr.mxu0 0.0
    %318 = vmatpush1.msra.mxu0 0.0
    %319 = vmatprep.subr.mxu0 0.0
    %320 = vmatpush1.msra.mxu0 0.0
    %321 = vmatprep.subr.mxu0 0.0
    %322 = vmatpush1.msra.mxu0 0.0
    %323 = vmatprep.subr.mxu0 0.0
    %324 = vmatpush1.msra.mxu0 0.0
    %325 = vmatprep.subr.mxu0 0.0
    %326 = vmatpush1.msra.mxu0 0.0
    %327 = vmatprep.mubr.f32.mxu0 0.0
    %328 = vmatmul.mubr.f32.gmra.mrb[0].mxu0 %v252
    %v329 = vpop.f32.mrb[0].mxu0
    %v330 = vadd.f32 %v250, %v329
    %v331 = vpop.f32.mrb[0].mxu0
    %332 = vmatprep.mubr.f32.mxu0 0.0
    %333 = vmatmul.mubr.f32.gmra.mrb[0].mxu0 %v255
    %v334 = vpop.f32.mrb[0].mxu0
    %v335 = vadd.f32 %v250, %v334
    %v336 = vpop.f32.mrb[0].mxu0
    %337 = vmatprep.mubr.f32.mxu0 0.0
    %338 = vmatmul.mubr.f32.gmra.mrb[0].mxu0 %v258
    %v339 = vpop.f32.mrb[0].mxu0
    %v340 = vadd.f32 %v250, %v339
    %v341 = vpop.f32.mrb[0].mxu0
    %342 = vmatprep.mubr.f32.mxu0 0.0
    %343 = vmatmul.mubr.f32.gmra.mrb[0].mxu0 %v261
    %v344 = vpop.f32.mrb[0].mxu0
    %v345 = vadd.f32 %v250, %v344
    %v346 = vpop.f32.mrb[0].mxu0
    %347 = vdwg.mxu0
    %v348 = vstv %s106
    %v349 = vmul.f32 %v348, %v330
    %v350 = vmul.f32 %v348, %v335
    %v351 = vmul.f32 %v348, %v340
    %v352 = vmul.f32 %v348, %v345
    %v353 = vtanh.pop %v349
    %v354 = vtanh.pop %v350
    %v355 = vtanh.pop %v351
    %v356 = vtanh.pop %v352
    %v357 = vlaneseq
    %v358 = vshrl.u32 %v357, 7
    %v359 = vsub.s32 4, %v358
    %v360 = vrot.slane %v111, %v359
    %v361 = vmul.f32 %v353, %v360
    %v362 = vmul.f32 %v354, %v360
    %v363 = vmul.f32 %v355, %v360
    %v364 = vmul.f32 %v356, %v360
    %v365 = vlaneseq
    %v366 = vshrl.u32 %v365, 7
    %v367 = vsub.s32 5, %v366
    %v368 = vrot.slane %v111, %v367
    %v369 = vadd.f32 %v361, %v368
    %v370 = vadd.f32 %v362, %v368
    %v371 = vadd.f32 %v363, %v368
    %v372 = vadd.f32 %v364, %v368
    %v373 = vld [vmem:[%s5] sm:$0xff]
    %v374 = vld [vmem:[%s5 + $0x8] sm:$0xff]
    %v375 = vld [vmem:[%s5 + $0x10] sm:$0xff]
    %v376 = vld [vmem:[%s5 + $0x18] sm:$0xff]
    %v377 = vld [vmem:[%s7] sm:$0x1]
    %v379 = vlaneseq
    %v380 = vshrl.u32 %v379, 7
    %v381 = vsub.s32 0, %v380
    %v382 = vrot.slane %v377, %v381
    %v385 = vsel %vm120, %v369, 0
    %v388 = vsel %vm120, %v370, 0
    %v391 = vsel %vm120, %v371, 0
    %v394 = vsel %vm120, %v372, 0
    %396 = vmatprep.subr.mxu0 0.0
    %397 = vmatpush1.msra.mxu0 %v373
    %398 = vmatprep.subr.mxu0 0.0
    %399 = vmatpush1.msra.mxu0 %v374
    %400 = vmatprep.subr.mxu0 0.0
    %401 = vmatpush1.msra.mxu0 %v375
    %402 = vmatprep.subr.mxu0 0.0
    %403 = vmatpush1.msra.mxu0 %v376
    %404 = vmatprep.subr.mxu0 0.0
    %405 = vmatpush1.msra.mxu0 0.0
    %406 = vmatprep.subr.mxu0 0.0
    %407 = vmatpush1.msra.mxu0 0.0
    %408 = vmatprep.subr.mxu0 0.0
    %409 = vmatpush1.msra.mxu0 0.0
    %410 = vmatprep.subr.mxu0 0.0
    %411 = vmatpush1.msra.mxu0 0.0
    %412 = vmatprep.subr.mxu0 0.0
    %413 = vmatpush1.msra.mxu0 0.0
    %414 = vmatprep.subr.mxu0 0.0
    %415 = vmatpush1.msra.mxu0 0.0
    %416 = vmatprep.subr.mxu0 0.0
    %417 = vmatpush1.msra.mxu0 0.0
    %418 = vmatprep.subr.mxu0 0.0
    %419 = vmatpush1.msra.mxu0 0.0
    %420 = vmatprep.subr.mxu0 0.0
    %421 = vmatpush1.msra.mxu0 0.0
    %422 = vmatprep.subr.mxu0 0.0
    %423 = vmatpush1.msra.mxu0 0.0
    %424 = vmatprep.subr.mxu0 0.0
    %425 = vmatpush1.msra.mxu0 0.0
    %426 = vmatprep.subr.mxu0 0.0
    %427 = vmatpush1.msra.mxu0 0.0
    %428 = vmatprep.subr.mxu0 0.0
    %429 = vmatpush1.msra.mxu0 0.0
    %430 = vmatprep.subr.mxu0 0.0
    %431 = vmatpush1.msra.mxu0 0.0
    %432 = vmatprep.subr.mxu0 0.0
    %433 = vmatpush1.msra.mxu0 0.0
    %434 = vmatprep.subr.mxu0 0.0
    %435 = vmatpush1.msra.mxu0 0.0
    %436 = vmatprep.subr.mxu0 0.0
    %437 = vmatpush1.msra.mxu0 0.0
    %438 = vmatprep.subr.mxu0 0.0
    %439 = vmatpush1.msra.mxu0 0.0
    %440 = vmatprep.subr.mxu0 0.0
    %441 = vmatpush1.msra.mxu0 0.0
    %442 = vmatprep.subr.mxu0 0.0
    %443 = vmatpush1.msra.mxu0 0.0
    %444 = vmatprep.subr.mxu0 0.0
    %445 = vmatpush1.msra.mxu0 0.0
    %446 = vmatprep.subr.mxu0 0.0
    %447 = vmatpush1.msra.mxu0 0.0
    %448 = vmatprep.subr.mxu0 0.0
    %449 = vmatpush1.msra.mxu0 0.0
    %450 = vmatprep.subr.mxu0 0.0
    %451 = vmatpush1.msra.mxu0 0.0
    %452 = vmatprep.subr.mxu0 0.0
    %453 = vmatpush1.msra.mxu0 0.0
    %454 = vmatprep.subr.mxu0 0.0
    %455 = vmatpush1.msra.mxu0 0.0
    %456 = vmatprep.subr.mxu0 0.0
    %457 = vmatpush1.msra.mxu0 0.0
    %458 = vmatprep.subr.mxu0 0.0
    %459 = vmatpush1.msra.mxu0 0.0
    %460 = vmatprep.mubr.f32.mxu0 0.0
    %461 = vmatmul.mubr.f32.gmra.mrb[0].mxu0 %v385
    %v462 = vpop.f32.mrb[0].mxu0
    %v463 = vadd.f32 %v382, %v462
    %v464 = vpop.f32.mrb[0].mxu0
    %465 = vmatprep.mubr.f32.mxu0 0.0
    %466 = vmatmul.mubr.f32.gmra.mrb[0].mxu0 %v388
    %v467 = vpop.f32.mrb[0].mxu0
    %v468 = vadd.f32 %v382, %v467
    %v469 = vpop.f32.mrb[0].mxu0
    %470 = vmatprep.mubr.f32.mxu0 0.0
    %471 = vmatmul.mubr.f32.gmra.mrb[0].mxu0 %v391
    %v472 = vpop.f32.mrb[0].mxu0
    %v473 = vadd.f32 %v382, %v472
    %v474 = vpop.f32.mrb[0].mxu0
    %475 = vmatprep.mubr.f32.mxu0 0.0
    %476 = vmatmul.mubr.f32.gmra.mrb[0].mxu0 %v394
    %v477 = vpop.f32.mrb[0].mxu0
    %v478 = vadd.f32 %v382, %v477
    %v479 = vpop.f32.mrb[0].mxu0
    %480 = vdwg.mxu0
    %v481 = vxor.u32 %v463, 2147483648
    %v482 = vxor.u32 %v468, 2147483648
    %v483 = vxor.u32 %v473, 2147483648
    %v484 = vxor.u32 %v478, 2147483648
    %v485 = vmul.f32 %v481, 1.442695
    %v486 = vpow.pop %v485
    %v487 = vmul.f32 %v482, 1.442695
    %v488 = vpow.pop %v487
    %v489 = vmul.f32 %v483, 1.442695
    %v490 = vpow.pop %v489
    %v491 = vmul.f32 %v484, 1.442695
    %v492 = vpow.pop %v491
    %v493 = vadd.f32 %v486, 1.0
    %v494 = vadd.f32 %v488, 1.0
    %v495 = vadd.f32 %v490, 1.0
    %v496 = vadd.f32 %v492, 1.0
    %v497 = vrcp.pop %v493
    %v498 = vmul.f32 1.0, %v497
    %v499 = vrcp.pop %v494
    %v500 = vmul.f32 1.0, %v499
    %v501 = vrcp.pop %v495
    %v502 = vmul.f32 1.0, %v501
    %v503 = vrcp.pop %v496
    %v504 = vmul.f32 1.0, %v503
    %v505 = vmul.f32 %v463, %v498
    %v506 = vmul.f32 %v468, %v500
    %v507 = vmul.f32 %v473, %v502
    %v508 = vmul.f32 %v478, %v504
    %vm509 = vcmask 130048
    %510 = vst.msk [vmem:[#allocation13] sm:$0xff] %vm509, %v505
    %511 = vst.msk [vmem:[#allocation13 + $0x8] sm:$0xff] %vm509, %v506
    %514 = vrot.lane.b32.xlu0 %v507, 16
    %v515 = vpop.permute.xlu0 %514
    %516 = vrot.lane.b32.xlu0 %v508, 16
    %v517 = vpop.permute.xlu0 %516
    %vm520 = vcmask 261248
    %521 = vst.msk [vmem:[#allocation13] sm:$0xff] %vm520, %v515
    %522 = vst.msk [vmem:[#allocation13 + $0x8] sm:$0xff] %vm520, %v517
    %v523 = vmul.f32 %v505, %v505
    %v524 = vmul.f32 %v506, %v506
    %v525 = vsel %vm509, %v523, 0.0
    %526 = vadd.xlane.f32.xlu0 %v525
    %v527 = vpop.xlane.xlu0 %526
    %v528 = vsel %vm509, %v524, 0.0
    %529 = vadd.xlane.f32.xlu0 %v528
    %v530 = vpop.xlane.xlu0 %529
    %v531 = vrsqrt.pop %v527
    %v532 = vrsqrt.pop %v530
    %v533 = vmul.f32 %v507, %v507
    %v534 = vmul.f32 %v508, %v508
    %v535 = vsel %vm509, %v533, 0.0
    %536 = vadd.xlane.f32.xlu0 %v535
    %v537 = vpop.xlane.xlu0 %536
    %v538 = vsel %vm509, %v534, 0.0
    %539 = vadd.xlane.f32.xlu0 %v538
    %v540 = vpop.xlane.xlu0 %539
    %v541 = vrsqrt.pop %v537
    %v542 = vrsqrt.pop %v540
    %v543 = vmul.f32 %v531, 2.0
    %v544 = vmul.f32 %v532, 2.0
    %v545 = vmul.f32 %v505, %v543
    %v546 = vmul.f32 %v506, %v544
    %v547 = vmul.f32 %v507, %v541
    %v548 = vmul.f32 %v508, %v542
    %v550 = vsel %vm509, %v545, 0
    %v553 = vsel %vm509, %v546, 0
    %v556 = vsel %vm509, %v547, 0
    %v559 = vsel %vm509, %v548, 0
    %561 = vmatprep.subr.mxu0 0.0
    %562 = vmatpush1.xpose.msra.mxu0 %v556
    %563 = vmatprep.subr.mxu0 0.0
    %564 = vmatpush1.xpose.msra.mxu0 %v559
    %565 = vmatprep.subr.mxu0 0.0
    %566 = vmatpush1.xpose.msra.mxu0 0.0
    %567 = vmatprep.subr.mxu0 0.0
    %568 = vmatpush1.xpose.msra.mxu0 0.0
    %569 = vmatprep.subr.mxu0 0.0
    %570 = vmatpush1.xpose.msra.mxu0 0.0
    %571 = vmatprep.subr.mxu0 0.0
    %572 = vmatpush1.xpose.msra.mxu0 0.0
    %573 = vmatprep.subr.mxu0 0.0
    %574 = vmatpush1.xpose.msra.mxu0 0.0
    %575 = vmatprep.subr.mxu0 0.0
    %576 = vmatpush1.xpose.msra.mxu0 0.0
    %577 = vmatprep.subr.mxu0 0.0
    %578 = vmatpush1.xpose.msra.mxu0 0.0
    %579 = vmatprep.subr.mxu0 0.0
    %580 = vmatpush1.xpose.msra.mxu0 0.0
    %581 = vmatprep.subr.mxu0 0.0
    %582 = vmatpush1.xpose.msra.mxu0 0.0
    %583 = vmatprep.subr.mxu0 0.0
    %584 = vmatpush1.xpose.msra.mxu0 0.0
    %585 = vmatprep.subr.mxu0 0.0
    %586 = vmatpush1.xpose.msra.mxu0 0.0
    %587 = vmatprep.subr.mxu0 0.0
    %588 = vmatpush1.xpose.msra.mxu0 0.0
    %589 = vmatprep.subr.mxu0 0.0
    %590 = vmatpush1.xpose.msra.mxu0 0.0
    %591 = vmatprep.subr.mxu0 0.0
    %592 = vmatpush1.xpose.msra.mxu0 0.0
    %593 = vmatprep.subr.mxu0 0.0
    %594 = vmatpush1.xpose.msra.mxu0 0.0
    %595 = vmatprep.subr.mxu0 0.0
    %596 = vmatpush1.xpose.msra.mxu0 0.0
    %597 = vmatprep.subr.mxu0 0.0
    %598 = vmatpush1.xpose.msra.mxu0 0.0
    %599 = vmatprep.subr.mxu0 0.0
    %600 = vmatpush1.xpose.msra.mxu0 0.0
    %601 = vmatprep.subr.mxu0 0.0
    %602 = vmatpush1.xpose.msra.mxu0 0.0
    %603 = vmatprep.subr.mxu0 0.0
    %604 = vmatpush1.xpose.msra.mxu0 0.0
    %605 = vmatprep.subr.mxu0 0.0
    %606 = vmatpush1.xpose.msra.mxu0 0.0
    %607 = vmatprep.subr.mxu0 0.0
    %608 = vmatpush1.xpose.msra.mxu0 0.0
    %609 = vmatprep.subr.mxu0 0.0
    %610 = vmatpush1.xpose.msra.mxu0 0.0
    %611 = vmatprep.subr.mxu0 0.0
    %612 = vmatpush1.xpose.msra.mxu0 0.0
    %613 = vmatprep.subr.mxu0 0.0
    %614 = vmatpush1.xpose.msra.mxu0 0.0
    %615 = vmatprep.subr.mxu0 0.0
    %616 = vmatpush1.xpose.msra.mxu0 0.0
    %617 = vmatprep.subr.mxu0 0.0
    %618 = vmatpush1.xpose.msra.mxu0 0.0
    %619 = vmatprep.subr.mxu0 0.0
    %620 = vmatpush1.xpose.msra.mxu0 0.0
    %621 = vmatprep.subr.mxu0 0.0
    %622 = vmatpush1.xpose.msra.mxu0 0.0
    %623 = vmatprep.subr.mxu0 0.0
    %624 = vmatpush1.xpose.msra.mxu0 0.0
    %625 = vmatprep.mubr.f32.mxu0 0.0
    %626 = vmatmul.mubr.f32.gmra.mrb[0].mxu0 %v550
    %v627 = vpop.f32.mrb[0].mxu0
    %v628 = vadd.f32 0.0, %v627
    %v629 = vpop.f32.mrb[0].mxu0
    %630 = vmatprep.mubr.f32.mxu0 0.0
    %631 = vmatmul.mubr.f32.gmra.mrb[0].mxu0 %v553
    %v632 = vpop.f32.mrb[0].mxu0
    %v633 = vadd.f32 0.0, %v632
    %v634 = vpop.f32.mrb[0].mxu0
    %635 = vdwg.mxu0
    %v636 = vmul.f32 %v628, 1.442695
    %v637 = vpow.pop %v636
    %v638 = vmul.f32 %v633, 1.442695
    %v639 = vpow.pop %v638
    %v640 = vld [vmem:[#allocation11] sm:$0xff]
    %v641 = vld [vmem:[#allocation11 + $0x8] sm:$0xff]
    %v642 = vld [vmem:[%s9] sm:$0xff]
    %v643 = vld [vmem:[%s9 + $0x8] sm:$0xff]
    %v644 = vsel %vm509, %v637, 0.0
    %645 = vadd.xlane.f32.xlu0 %v644
    %v646 = vpop.xlane.xlu0 %645
    %v647 = vsel %vm509, %v639, 0.0
    %648 = vadd.xlane.f32.xlu0 %v647
    %v649 = vpop.xlane.xlu0 %648
    %v650 = vadd.f32 %v646, 1e-06
    %v651 = vadd.f32 %v649, 1e-06
    %v652 = vmul.f32 %v637, %v640
    %v653 = vmul.f32 %v639, %v641
    %v654 = vsel %vm509, %v652, 0.0
    %655 = vadd.xlane.f32.xlu0 %v654
    %v656 = vpop.xlane.xlu0 %655
    %v657 = vsel %vm509, %v653, 0.0
    %658 = vadd.xlane.f32.xlu0 %v657
    %v659 = vpop.xlane.xlu0 %658
    %v660 = vrcp.pop %v650
    %v661 = vmul.f32 %v656, %v660
    %v662 = vrcp.pop %v651
    %v663 = vmul.f32 %v659, %v662
    %v664 = vlog2.pop %v661
    %v665 = vmul.f32 %v664, 0.6931472
    %v666 = vlog2.pop %v663
    %v667 = vmul.f32 %v666, 0.6931472
    %vm668 = vcmask 7168
    %v669 = vsel %vm668, %v665, 0.0
    %v670 = vsel %vm668, %v667, 0.0
    %v671 = vadd.f32 %v669, %v670
    %672 = vadd.xlane.f32.xlu0 %v671
    %v673 = vpop.xlane.xlu0 %672
    %v674 = vrot.slane %v673, 4
    %v675 = vadd.f32 %v673, %v674
    %v676 = vrot.slane %v675, 2
    %v677 = vadd.f32 %v675, %v676
    %v678 = vrot.slane %v677, 1
    %v679 = vadd.f32 %v677, %v678
    %s680 = vtos %v679
    %v681 = vrcp.pop 16.0
    %s682 = vtos %v681
    %s683 = smul.f32 %s680, %s682
    %s684 = ssub.f32 0.0, %s683
    %v685 = vadd.f32 %v644, %v647
    %v686 = vrot.slane %v685, 4
    %v687 = vadd.f32 %v685, %v686
    %v688 = vrot.slane %v687, 2
    %v689 = vadd.f32 %v687, %v688
    %v690 = vrot.slane %v689, 1
    %v691 = vadd.f32 %v689, %v690
    %v692 = vadd.f32 %v691, 1e-06
    %v693 = vmul.f32 %v637, %v642
    %v694 = vmul.f32 %v639, %v643
    %v695 = vsel %vm509, %v693, 0.0
    %v696 = vsel %vm509, %v694, 0.0
    %v697 = vadd.f32 %v695, %v696
    %v698 = vrot.slane %v697, 4
    %v699 = vadd.f32 %v697, %v698
    %v700 = vrot.slane %v699, 2
    %v701 = vadd.f32 %v699, %v700
    %v702 = vrot.slane %v701, 1
    %v703 = vadd.f32 %v701, %v702
    %v704 = vrcp.pop %v692
    %v705 = vmul.f32 %v703, %v704
    %v706 = vlog2.pop %v705
    %v707 = vmul.f32 %v706, 0.6931472
    %vm708 = vcmask 122880
    %v709 = vsel %vm708, %v707, 0.0
    %710 = vadd.xlane.f32.xlu0 %v709
    %v711 = vpop.xlane.xlu0 %710
    %v712 = vrot.slane %v711, 4
    %v713 = vadd.f32 %v711, %v712
    %v714 = vrot.slane %v713, 2
    %v715 = vadd.f32 %v713, %v714
    %v716 = vrot.slane %v715, 1
    %v717 = vadd.f32 %v715, %v716
    %s718 = vtos %v717
    %v719 = vrcp.pop 16.0
    %s720 = vtos %v719
    %s721 = smul.f32 %s718, %s720
    %s722 = ssub.f32 0.0, %s721
    %s723 = smul.f32 %s684, 0.5
    %s724 = smul.f32 %s722, 0.5
    %s725 = sadd.f32 %s723, %s724
    %s726 = scalar_lea.smem [#allocation14], 0
    %727 = sst [smem:[%s726]] %s725
    // Predicated region
    $region62: #{tpu_custom_call.1} parent=1 // pred_check
      _
    $region63: #{tpu_custom_call.1} parent=1 // pred_check_branch
      %729 = sbr.rel (0) target = $region65
    $region64: #{tpu_custom_call.1} parent=1 // pred_region
      %s731 = ssub.s32 256, 256
      %732 = vsyncadd [#allocation4], %s731
      %s733 = sshll.u32 [#allocation13], 4
      %s734 = int_to_ptr.vmem [resolvable:$true] %s733
      %739 = dma.vmem_to_hbm [thread:$0]  %s734, 256, %s10, [#allocation4], 128, 128, 8
    $region65: #{tpu_custom_call.1} parent=1 // pred_fallthru
      _
    // Predicated region
    $region66: #{tpu_custom_call.1} parent=1 // pred_check
      _
    $region67: #{tpu_custom_call.1} parent=1 // pred_check_branch
      %741 = sbr.rel (0) target = $region69
    $region68: #{tpu_custom_call.1} parent=1 // pred_region
      %s743 = ssub.s32 16, 16
      %744 = vsyncadd [#allocation5], %s743
      %747 = dma.smem_to_hbm [#allocation14], 16, %s11, [#allocation5]
    $region69: #{tpu_custom_call.1} parent=1 // pred_fallthru
      _
    // Predicated region
    $region70: #{tpu_custom_call.1} parent=1 // pred_check
      _
    $region71: #{tpu_custom_call.1} parent=1 // pred_check_branch
      %749 = sbr.rel (0) target = $region73
    $region72: #{tpu_custom_call.1} parent=1 // pred_region
      %750 = dma.done [#allocation4], 256
    $region73: #{tpu_custom_call.1} parent=1 // pred_fallthru
      _
    // Predicated region
    $region74: #{tpu_custom_call.1} parent=1 // pred_check
      _
    $region75: #{tpu_custom_call.1} parent=1 // pred_check_branch
      %752 = sbr.rel (0) target = $region77
    $region76: #{tpu_custom_call.1} parent=1 // pred_region
      %753 = dma.done [#allocation5], 16
    $region77: #{tpu_custom_call.1} parent=1 // pred_fallthru
      _
    %754 = sfence
    %755 = vsyncpa [#allocation3], 1
    %756 = vsyncpa [#allocation9], 1
    %757 = vsyncpa [#allocation12], 1
    %758 = vsyncpa [#allocation4], 1
    %759 = vsyncpa [#allocation5], 1
    %760 = vsyncpa [#allocation6], 1

</llo_original>
